<compile_context>
chip_gen: v5e
topology: v5e:2x2
jax: 0.10.0
libtpu: 0.0.40
codegen_flags: <defaults>
</compile_context>

<pallas_src>
import functools

import jax
import jax.numpy as jnp
from jax.experimental import pallas as pl
from jax.experimental.pallas import tpu as pltpu


def _round_up(x, m):
    return ((x + m - 1) // m) * m


def gru_cell_kernel(
    xh_ref,                       # [tb, in_p + hid_p]  (x | h)
    wbig_ref, whh_ref, wout_ref,  # fused gate weights, candidate-h weights, out weights
    b3_ref, bout_ref,             # fused gate biases, out bias
    out_ref, hnew_ref,
    *, in_p, hid_p,
):
    f32 = jnp.float32
    xh = xh_ref[...]
    h = xh[:, in_p:]              # lane-aligned static slice (in_p % 128 == 0)

    # One fused MXU matmul: pre-activations for (r | z | x-part of candidate).
    # [tb, 3*hid_p]
    g = jnp.dot(xh, wbig_ref[...], preferred_element_type=f32) + b3_ref[...]

    rt = jax.nn.sigmoid(g[:, :hid_p])
    zt = jax.nn.sigmoid(g[:, hid_p:2 * hid_p])
    # Candidate: tanh(w_xh(x) + b + w_hh(Rt * h))  (Rt applied BEFORE w_hh, as in the module)
    ht_cand = jnp.tanh(
        g[:, 2 * hid_p:]
        + jnp.dot(rt * h, whh_ref[...], preferred_element_type=f32)
    )

    h_new = zt * h + (1.0 - zt) * ht_cand
    out = jnp.dot(h_new, wout_ref[...], preferred_element_type=f32) + bout_ref[...]

    out_ref[...] = out.astype(out_ref.dtype)
    hnew_ref[...] = h_new.astype(hnew_ref.dtype)


def pack_gru_params(params, in_feature, hidden_size, out_feature):
    """One-time host-side prep: transpose, fuse, pad weights/biases to 128-lane widths."""
    in_p = _round_up(in_feature, 128)
    hid_p = _round_up(hidden_size, 128)
    out_p = _round_up(out_feature, 128)

    def pad_wT(name, rows_p, cols_p):
        wt = jnp.asarray(params[name], jnp.float32).T            # [in, out]
        return jnp.pad(wt, ((0, rows_p - wt.shape[0]), (0, cols_p - wt.shape[1])))

    def pad_b(b, cols_p):
        b = jnp.asarray(b, jnp.float32)
        return jnp.pad(b, (0, cols_p - b.shape[0]))

    # Fused big weight, gate order (r, z, h):
    #   rows [0, in_p)        : [wxr | wxz | wxh]
    #   rows [in_p, in_p+hid_p): [whr | whz |  0 ]   (candidate's h-side handled by w_hh on Rt*h)
    w_x3 = jnp.concatenate(
        [pad_wT("w_xr", in_p, hid_p),
         pad_wT("w_xz", in_p, hid_p),
         pad_wT("w_xh", in_p, hid_p)], axis=1)                    # [in_p, 3*hid_p]
    w_h3 = jnp.concatenate(
        [pad_wT("w_hr", hid_p, hid_p),
         pad_wT("w_hz", hid_p, hid_p),
         jnp.zeros((hid_p, hid_p), jnp.float32)], axis=1)         # [hid_p, 3*hid_p]
    w_big = jnp.concatenate([w_x3, w_h3], axis=0)                 # [in_p+hid_p, 3*hid_p]

    w_hh = pad_wT("w_hh", hid_p, hid_p)
    w_out = pad_wT("w_out", hid_p, out_p)

    # Fused biases (x-side + h-side pre-summed per gate): [1, 3*hid_p]
    b_3 = jnp.concatenate(
        [pad_b(params["b_xr"] + params["b_hr"], hid_p),
         pad_b(params["b_xz"] + params["b_hz"], hid_p),
         pad_b(params["b_xh"] + params["b_hh"], hid_p)]).reshape(1, 3 * hid_p)
    b_out = pad_b(params["b_out"], out_p).reshape(1, out_p)

    return dict(
        w_big=w_big, w_hh=w_hh, w_out=w_out,
        b_3=b_3, b_out=b_out,
        dims=(in_feature, hidden_size, out_feature, in_p, hid_p, out_p),
    )


def gru_cell_forward(x, hidden, packed):
    in_f, hid, out_f, in_p, hid_p, out_p = packed["dims"]
    B = x.shape[0]

    # Pad batch to sublane multiple; tile the batch axis ("parallel" -> megacore on v7x).
    B_p = _round_up(max(B, 8), 8)
    if B_p > 128:
        tb = 128
        B_p = _round_up(B_p, tb)
    else:
        tb = B_p
    grid = (B_p // tb,)

    # Single lane-aligned input slab: [x | h], zero-padded.
    xh_p = (
        jnp.zeros((B_p, in_p + hid_p), jnp.float32)
        .at[:B, :in_f].set(x.astype(jnp.float32))
        .at[:B, in_p:in_p + hid].set(hidden.astype(jnp.float32))
    )

    batch_spec = lambda cols: pl.BlockSpec((tb, cols), lambda i: (i, 0))
    resident = lambda rows, cols: pl.BlockSpec((rows, cols), lambda i: (0, 0))

    in_specs = [
        batch_spec(in_p + hid_p),            # xh
        resident(in_p + hid_p, 3 * hid_p),   # w_big
        resident(hid_p, hid_p),              # w_hh
        resident(hid_p, out_p),              # w_out
        resident(1, 3 * hid_p),              # b_3
        resident(1, out_p),                  # b_out
    ]
    out_specs = (batch_spec(out_p), batch_spec(hid_p))

    # Advisory cost + explicit VMEM budget (tiny here; guard for scaled-up hid on v7x's 64 MiB).
    flops = 2 * B_p * ((in_p + hid_p) * 3 * hid_p + hid_p * hid_p + hid_p * out_p)
    transcendentals = 3 * B_p * hid_p
    weight_elems = ((in_p + hid_p) * 3 * hid_p + hid_p * hid_p + hid_p * out_p
                    + 3 * hid_p + out_p)
    tile_elems = tb * (in_p + 2 * hid_p + out_p)
    bytes_accessed = 4 * (B_p * (in_p + 2 * hid_p + out_p) + weight_elems)
    vmem_limit = min(4 * (2 * weight_elems + 4 * tile_elems) + (8 << 20), 64 << 20)

    out_p_arr, hnew_p_arr = pl.pallas_call(
        functools.partial(gru_cell_kernel, in_p=in_p, hid_p=hid_p),
        grid=grid,
        in_specs=in_specs,
        out_specs=out_specs,
        out_shape=(
            jax.ShapeDtypeStruct((B_p, out_p), jnp.float32),
            jax.ShapeDtypeStruct((B_p, hid_p), jnp.float32),
        ),
        compiler_params=pltpu.CompilerParams(
            dimension_semantics=("parallel",),
            vmem_limit_bytes=vmem_limit,
        ),
        cost_estimate=pl.CostEstimate(
            flops=flops,
            transcendentals=transcendentals,
            bytes_accessed=bytes_accessed,
        ),
    )(xh_p,
      packed["w_big"], packed["w_hh"], packed["w_out"],
      packed["b_3"], packed["b_out"])

    return out_p_arr[:B, :out_f], hnew_p_arr[:B, :hid]


def init_params(key, in_feature, hidden_size, out_feature):
    """Deterministic synthetic parameters (PyTorch nn.Linear shapes: W [out, in], b [out])."""
    keys = jax.random.split(key, 14)
    names_shapes = [
        ("w_xr", (hidden_size, in_feature)), ("b_xr", (hidden_size,)),
        ("w_hr", (hidden_size, hidden_size)), ("b_hr", (hidden_size,)),
        ("w_xz", (hidden_size, in_feature)), ("b_xz", (hidden_size,)),
        ("w_hz", (hidden_size, hidden_size)), ("b_hz", (hidden_size,)),
        ("w_xh", (hidden_size, in_feature)), ("b_xh", (hidden_size,)),
        ("w_hh", (hidden_size, hidden_size)), ("b_hh", (hidden_size,)),
        ("w_out", (out_feature, hidden_size)), ("b_out", (out_feature,)),
    ]
    p = {}
    for (name, shape), k in zip(names_shapes, keys):
        p[name] = jax.random.normal(k, shape, dtype=jnp.float32) * 0.1
    return p


def gru_cell_ref(x, hidden, p):
    """Pure-JAX reference mirroring the PyTorch forward exactly."""
    lin = lambda v, w, b: v @ p[w].T + p[b]
    rt = jax.nn.sigmoid(lin(x, "w_xr", "b_xr") + lin(hidden, "w_hr", "b_hr"))
    zt = jax.nn.sigmoid(lin(x, "w_xz", "b_xz") + lin(hidden, "w_hz", "b_hz"))
    ht_ = jnp.tanh(lin(x, "w_xh", "b_xh") + lin(rt * hidden, "w_hh", "b_hh"))
    h_new = zt * hidden + (1.0 - zt) * ht_
    out = lin(h_new, "w_out", "b_out")
    return out, h_new


if __name__ == "__main__":
    in_feature, hidden_size, out_feature = 16, 32, 8
    batch = 8

    key = jax.random.PRNGKey(0)
    k_params, k_x, k_h = jax.random.split(key, 3)

    params = init_params(k_params, in_feature, hidden_size, out_feature)
    x = jax.random.normal(k_x, (batch, in_feature), dtype=jnp.float32)
    hidden = jax.random.normal(k_h, (batch, hidden_size), dtype=jnp.float32)

    packed = pack_gru_params(params, in_feature, hidden_size, out_feature)

    out, h_new = gru_cell_forward(x, hidden, packed)
    out = jax.block_until_ready(out)
    h_new = jax.block_until_ready(h_new)

    out_ref, h_ref = gru_cell_ref(x, hidden, params)
    assert jnp.allclose(out, out_ref, atol=1e-5, rtol=1e-5)
    assert jnp.allclose(h_new, h_ref, atol=1e-5, rtol=1e-5)

    print("KERNEL_OK")
</pallas_src>

<mosaic_0001>
module attributes {stable_mosaic.version = 11 : i64} {
  func.func @gru_cell_kernel(%arg0: i32, %arg1: memref<8x256xf32, #tpu.memory_space<vmem>>, %arg2: memref<256x384xf32, #tpu.memory_space<vmem>>, %arg3: memref<128x128xf32, #tpu.memory_space<vmem>>, %arg4: memref<128x128xf32, #tpu.memory_space<vmem>>, %arg5: memref<1x384xf32, #tpu.memory_space<vmem>>, %arg6: memref<1x128xf32, #tpu.memory_space<vmem>>, %arg7: memref<8x128xf32, #tpu.memory_space<vmem>>, %arg8: memref<8x128xf32, #tpu.memory_space<vmem>>) attributes {dimension_semantics = [#tpu.dimension_semantics<parallel>], iteration_bounds = array<i64: 1>, scalar_prefetch = 0 : i64, scratch_operands = 0 : i64, tpu.core_type = #tpu.core_type<tc>, window_params = [{transform_indices = @transform_0, window_bounds = array<i64: 8, 256>}, {pipeline_mode = #tpu.pipeline_mode<synchronous>, transform_indices = @transform_1, window_bounds = array<i64: 256, 384>}, {pipeline_mode = #tpu.pipeline_mode<synchronous>, transform_indices = @transform_2, window_bounds = array<i64: 128, 128>}, {pipeline_mode = #tpu.pipeline_mode<synchronous>, transform_indices = @transform_3, window_bounds = array<i64: 128, 128>}, {pipeline_mode = #tpu.pipeline_mode<synchronous>, transform_indices = @transform_4, window_bounds = array<i64: 1, 384>}, {pipeline_mode = #tpu.pipeline_mode<synchronous>, transform_indices = @transform_5, window_bounds = array<i64: 1, 128>}, {transform_indices = @transform_6, window_bounds = array<i64: 8, 128>}, {transform_indices = @transform_7, window_bounds = array<i64: 8, 128>}]} {
    %c0 = arith.constant 0 : index
    %c0_0 = arith.constant 0 : index
    %0 = vector.load %arg1[%c0, %c0_0] : memref<8x256xf32, #tpu.memory_space<vmem>>, vector<8x256xf32>
    %1 = vector.extract_strided_slice %0 {offsets = [0, 128], sizes = [8, 128], strides = [1, 1]} : vector<8x256xf32> to vector<8x128xf32>
    %c0_1 = arith.constant 0 : index
    %c0_2 = arith.constant 0 : index
    %2 = vector.load %arg2[%c0_1, %c0_2] : memref<256x384xf32, #tpu.memory_space<vmem>>, vector<256x384xf32>
    %cst = arith.constant dense<0.000000e+00> : vector<8x384xf32>
    %3 = tpu.matmul %0, %2, %cst {dimension_numbers = #tpu.dot_dimension_numbers<[1], [0], [0], [1], [0, 0, 1, 1], [], []>} : vector<8x256xf32>, vector<256x384xf32>, vector<8x384xf32> -> vector<8x384xf32>
    %c0_3 = arith.constant 0 : index
    %c0_4 = arith.constant 0 : index
    %4 = vector.load %arg5[%c0_3, %c0_4] : memref<1x384xf32, #tpu.memory_space<vmem>>, vector<1x384xf32>
    %5 = vector.broadcast %4 : vector<1x384xf32> to vector<8x384xf32>
    %6 = arith.addf %3, %5 : vector<8x384xf32>
    %7 = vector.extract_strided_slice %6 {offsets = [0, 0], sizes = [8, 128], strides = [1, 1]} : vector<8x384xf32> to vector<8x128xf32>
    %8 = arith.negf %7 : vector<8x128xf32>
    %9 = math.exp %8 : vector<8x128xf32>
    %cst_5 = arith.constant 1.000000e+00 : f32
    %10 = vector.broadcast %cst_5 : f32 to vector<8x128xf32>
    %11 = arith.addf %10, %9 : vector<8x128xf32>
    %12 = arith.divf %10, %11 : vector<8x128xf32>
    %13 = vector.extract_strided_slice %6 {offsets = [0, 128], sizes = [8, 128], strides = [1, 1]} : vector<8x384xf32> to vector<8x128xf32>
    %14 = arith.negf %13 : vector<8x128xf32>
    %15 = math.exp %14 : vector<8x128xf32>
    %cst_6 = arith.constant 1.000000e+00 : f32
    %16 = vector.broadcast %cst_6 : f32 to vector<8x128xf32>
    %17 = arith.addf %16, %15 : vector<8x128xf32>
    %18 = arith.divf %16, %17 : vector<8x128xf32>
    %19 = vector.extract_strided_slice %6 {offsets = [0, 256], sizes = [8, 128], strides = [1, 1]} : vector<8x384xf32> to vector<8x128xf32>
    %20 = arith.mulf %12, %1 : vector<8x128xf32>
    %c0_7 = arith.constant 0 : index
    %c0_8 = arith.constant 0 : index
    %21 = vector.load %arg3[%c0_7, %c0_8] : memref<128x128xf32, #tpu.memory_space<vmem>>, vector<128x128xf32>
    %cst_9 = arith.constant dense<0.000000e+00> : vector<8x128xf32>
    %22 = tpu.matmul %20, %21, %cst_9 {dimension_numbers = #tpu.dot_dimension_numbers<[1], [0], [0], [1], [0, 0, 1, 1], [], []>} : vector<8x128xf32>, vector<128x128xf32>, vector<8x128xf32> -> vector<8x128xf32>
    %23 = arith.addf %19, %22 : vector<8x128xf32>
    %24 = math.tanh %23 : vector<8x128xf32>
    %25 = arith.mulf %18, %1 : vector<8x128xf32>
    %cst_10 = arith.constant 1.000000e+00 : f32
    %26 = vector.broadcast %cst_10 : f32 to vector<8x128xf32>
    %27 = arith.subf %26, %18 : vector<8x128xf32>
    %28 = arith.mulf %27, %24 : vector<8x128xf32>
    %29 = arith.addf %25, %28 : vector<8x128xf32>
    %c0_11 = arith.constant 0 : index
    %c0_12 = arith.constant 0 : index
    %30 = vector.load %arg4[%c0_11, %c0_12] : memref<128x128xf32, #tpu.memory_space<vmem>>, vector<128x128xf32>
    %cst_13 = arith.constant dense<0.000000e+00> : vector<8x128xf32>
    %31 = tpu.matmul %29, %30, %cst_13 {dimension_numbers = #tpu.dot_dimension_numbers<[1], [0], [0], [1], [0, 0, 1, 1], [], []>} : vector<8x128xf32>, vector<128x128xf32>, vector<8x128xf32> -> vector<8x128xf32>
    %c0_14 = arith.constant 0 : index
    %c0_15 = arith.constant 0 : index
    %32 = vector.load %arg6[%c0_14, %c0_15] : memref<1x128xf32, #tpu.memory_space<vmem>>, vector<1x128xf32>
    %33 = vector.broadcast %32 : vector<1x128xf32> to vector<8x128xf32>
    %34 = arith.addf %31, %33 : vector<8x128xf32>
    %c0_16 = arith.constant 0 : index
    %c0_17 = arith.constant 0 : index
    %35 = vector.load %arg7[%c0_16, %c0_17] : memref<8x128xf32, #tpu.memory_space<vmem>>, vector<8x128xf32>
    tpu.vector_store %arg7[%c0_16, %c0_17], %34 {strides = array<i32>} : memref<8x128xf32, #tpu.memory_space<vmem>>, vector<8x128xf32>,
    %c0_18 = arith.constant 0 : index
    %c0_19 = arith.constant 0 : index
    %36 = vector.load %arg8[%c0_18, %c0_19] : memref<8x128xf32, #tpu.memory_space<vmem>>, vector<8x128xf32>
    tpu.vector_store %arg8[%c0_18, %c0_19], %29 {strides = array<i32>} : memref<8x128xf32, #tpu.memory_space<vmem>>, vector<8x128xf32>,
    return
  }
  func.func @transform_0(%arg0: i32) -> (i32, i32) {
    %c0_i32 = arith.constant 0 : i32
    %c0_i32_0 = arith.constant 0 : i32
    return %arg0, %c0_i32 : i32, i32
  }
  func.func @transform_1(%arg0: i32) -> (i32, i32) {
    %c0_i32 = arith.constant 0 : i32
    %c0_i32_0 = arith.constant 0 : i32
    %c0_i32_1 = arith.constant 0 : i32
    return %c0_i32, %c0_i32_0 : i32, i32
  }
  func.func @transform_2(%arg0: i32) -> (i32, i32) {
    %c0_i32 = arith.constant 0 : i32
    %c0_i32_0 = arith.constant 0 : i32
    %c0_i32_1 = arith.constant 0 : i32
    return %c0_i32, %c0_i32_0 : i32, i32
  }
  func.func @transform_3(%arg0: i32) -> (i32, i32) {
    %c0_i32 = arith.constant 0 : i32
    %c0_i32_0 = arith.constant 0 : i32
    %c0_i32_1 = arith.constant 0 : i32
    return %c0_i32, %c0_i32_0 : i32, i32
  }
  func.func @transform_4(%arg0: i32) -> (i32, i32) {
    %c0_i32 = arith.constant 0 : i32
    %c0_i32_0 = arith.constant 0 : i32
    %c0_i32_1 = arith.constant 0 : i32
    return %c0_i32, %c0_i32_0 : i32, i32
  }
  func.func @transform_5(%arg0: i32) -> (i32, i32) {
    %c0_i32 = arith.constant 0 : i32
    %c0_i32_0 = arith.constant 0 : i32
    %c0_i32_1 = arith.constant 0 : i32
    return %c0_i32, %c0_i32_0 : i32, i32
  }
  func.func @transform_6(%arg0: i32) -> (i32, i32) {
    %c0_i32 = arith.constant 0 : i32
    %c0_i32_0 = arith.constant 0 : i32
    return %arg0, %c0_i32 : i32, i32
  }
  func.func @transform_7(%arg0: i32) -> (i32, i32) {
    %c0_i32 = arith.constant 0 : i32
    %c0_i32_0 = arith.constant 0 : i32
    return %arg0, %c0_i32 : i32, i32
  }
}

</mosaic_0001>

<llo_original>
// kernel: tpu_custom_call.1
$region0: #{tpu_custom_call.1}
  #allocation0 [shape = 'u32[]', space=smem, size = 0x4, offset = 0x4, fixed_abs, tag = 'smem constant byte address 0x4 - core index']
  #allocation1 [shape = 'u32[72,128]{1,0:T(1,128)}', space=vmem, size = 0x9000, scoped, tag = 'internal scratch']
  %s0 = inlined_call_operand.hbm [shape: f32[8,256], index: 0, kind: input, shape index: {}]
  %s1 = inlined_call_operand.hbm [shape: f32[256,384], index: 1, kind: input, shape index: {}]
  %s2 = inlined_call_operand.hbm [shape: f32[128,128], index: 2, kind: input, shape index: {}]
  %s3 = inlined_call_operand.hbm [shape: f32[128,128], index: 3, kind: input, shape index: {}]
  %s4 = inlined_call_operand.vmem [shape: f32[1,384], index: 4, kind: input, shape index: {}]
  %s5 = inlined_call_operand.vmem [shape: f32[1,128], index: 5, kind: input, shape index: {}]
  %s6 = inlined_call_operand.hbm [shape: f32[8,128], index: 6, kind: output, shape index: {0}]
  %s7 = inlined_call_operand.hbm [shape: f32[8,128], index: 7, kind: output, shape index: {1}]
  %8 = xla_tuple %s6, %s7
  %s9 = sld [smem:[#allocation0]]
  $region58: #{tpu_custom_call.1} parent=0
    _
  %s11 = ssub.s32 1, %s9
  %s12 = scalar_select 0, %s11, %s9
  $region1: #{tpu_custom_call.1} parent=0
    #allocation2 [shape = 'u8[8192]{0}', space=vmem, size = 0x2000, scoped, tag = 'input window, operand 0, single buffered']
    #allocation3 [shape = 's32[1]{0}', space=sflag, size = 0x4, scoped, tag = 'scoped memory for tpu_custom_call.1']
    #allocation4 [shape = 's32[1]{0}', space=sflag, size = 0x4, scoped, tag = 'scoped memory for tpu_custom_call.1']
    #allocation5 [shape = 'u8[393216]{0}', space=vmem, size = 0x60000, scoped, tag = 'input window, operand 1, single buffered']
    #allocation6 [shape = 's32[1]{0}', space=sflag, size = 0x4, scoped, tag = 'scoped memory for tpu_custom_call.1']
    #allocation7 [shape = 'u8[65536]{0}', space=vmem, size = 0x10000, scoped, tag = 'input window, operand 2, single buffered']
    #allocation8 [shape = 'u8[65536]{0}', space=vmem, size = 0x10000, scoped, tag = 'input window, operand 3, single buffered']
    #allocation9 [shape = 's32[1]{0}', space=sflag, size = 0x4, scoped, tag = 'scoped memory for tpu_custom_call.1']
    #allocation10 [shape = 'u8[4096]{0}', space=vmem, size = 0x1000, scoped, tag = 'output window, operand 0, single buffered']
    #allocation11 [shape = 'u8[4096]{0}', space=vmem, size = 0x1000, scoped, tag = 'output window, operand 1, single buffered']
    #allocation12 [shape = 's32[1]{0}', space=sflag, size = 0x4, scoped, tag = 'scoped memory for tpu_custom_call.1']
    %13 = vsyncpa [#allocation3], 0
    %14 = vsyncpa [#allocation6], 0
    %15 = vsyncpa [#allocation9], 0
    %16 = vsyncpa [#allocation4], 0
    %17 = vsyncpa [#allocation12], 0
    // Predicated region
    $region2: #{tpu_custom_call.1} parent=1 // pred_check
      _
    $region3: #{tpu_custom_call.1} parent=1 // pred_check_branch
      %19 = sbr.rel (0) target = $region5
    $region4: #{tpu_custom_call.1} parent=1 // pred_region
      %21 = vsyncadd [#allocation3], 0
      %s23 = sshll.u32 %s0, 4
      %s24 = int_to_ptr.hbm [resolvable:$true] %s23
      %s25 = sshll.u32 [#allocation2], 4
      %s26 = int_to_ptr.vmem [resolvable:$true] %s25
      %28 = dma.hbm_to_vmem [thread:$0]  %s24, 256, %s26, [#allocation3]
    $region5: #{tpu_custom_call.1} parent=1 // pred_fallthru
      _
    // Predicated region
    $region6: #{tpu_custom_call.1} parent=1 // pred_check
      _
    $region7: #{tpu_custom_call.1} parent=1 // pred_check_branch
      %30 = sbr.rel (0) target = $region9
    $region8: #{tpu_custom_call.1} parent=1 // pred_region
      %32 = vsyncadd [#allocation6], 0
      %s33 = sshll.u32 %s1, 4
      %s34 = int_to_ptr.hbm [resolvable:$true] %s33
      %s35 = sshll.u32 [#allocation5], 4
      %s36 = int_to_ptr.vmem [resolvable:$true] %s35
      %41 = dma.hbm_to_vmem [thread:$0]  %s34, 12288, %s36, [#allocation6], 384, 384, 24
    $region9: #{tpu_custom_call.1} parent=1 // pred_fallthru
      _
    // Predicated region
    $region10: #{tpu_custom_call.1} parent=1 // pred_check
      _
    $region11: #{tpu_custom_call.1} parent=1 // pred_check_branch
      %43 = sbr.rel (0) target = $region13
    $region12: #{tpu_custom_call.1} parent=1 // pred_region
      %45 = vsyncadd [#allocation6], 0
      %s46 = sshll.u32 %s2, 4
      %s47 = int_to_ptr.hbm [resolvable:$true] %s46
      %s48 = sshll.u32 [#allocation7], 4
      %s49 = int_to_ptr.vmem [resolvable:$true] %s48
      %54 = dma.hbm_to_vmem [thread:$0]  %s47, 2048, %s49, [#allocation6], 128, 128, 8
    $region13: #{tpu_custom_call.1} parent=1 // pred_fallthru
      _
    // Predicated region
    $region14: #{tpu_custom_call.1} parent=1 // pred_check
      _
    $region15: #{tpu_custom_call.1} parent=1 // pred_check_branch
      %56 = sbr.rel (0) target = $region17
    $region16: #{tpu_custom_call.1} parent=1 // pred_region
      %58 = vsyncadd [#allocation9], 0
      %s59 = sshll.u32 %s3, 4
      %s60 = int_to_ptr.hbm [resolvable:$true] %s59
      %s61 = sshll.u32 [#allocation8], 4
      %s62 = int_to_ptr.vmem [resolvable:$true] %s61
      %67 = dma.hbm_to_vmem [thread:$0]  %s60, 2048, %s62, [#allocation9], 128, 128, 8
    $region17: #{tpu_custom_call.1} parent=1 // pred_fallthru
      _
    // Predicated region
    $region18: #{tpu_custom_call.1} parent=1 // pred_check
      _
    $region19: #{tpu_custom_call.1} parent=1 // pred_check_branch
      %69 = sbr.rel (0) target = $region21
    $region20: #{tpu_custom_call.1} parent=1 // pred_region
      _
    $region21: #{tpu_custom_call.1} parent=1 // pred_fallthru
      _
    // Predicated region
    $region22: #{tpu_custom_call.1} parent=1 // pred_check
      _
    $region23: #{tpu_custom_call.1} parent=1 // pred_check_branch
      %71 = sbr.rel (0) target = $region25
    $region24: #{tpu_custom_call.1} parent=1 // pred_region
      _
    $region25: #{tpu_custom_call.1} parent=1 // pred_fallthru
      _
    // Predicated region
    $region26: #{tpu_custom_call.1} parent=1 // pred_check
      _
    $region27: #{tpu_custom_call.1} parent=1 // pred_check_branch
      %73 = sbr.rel (0) target = $region29
    $region28: #{tpu_custom_call.1} parent=1 // pred_region
      %75 = dma.done [#allocation3], 256
    $region29: #{tpu_custom_call.1} parent=1 // pred_fallthru
      _
    // Predicated region
    $region30: #{tpu_custom_call.1} parent=1 // pred_check
      _
    $region31: #{tpu_custom_call.1} parent=1 // pred_check_branch
      %77 = sbr.rel (0) target = $region33
    $region32: #{tpu_custom_call.1} parent=1 // pred_region
      %79 = dma.done [#allocation6], 12288
    $region33: #{tpu_custom_call.1} parent=1 // pred_fallthru
      _
    // Predicated region
    $region34: #{tpu_custom_call.1} parent=1 // pred_check
      _
    $region35: #{tpu_custom_call.1} parent=1 // pred_check_branch
      %81 = sbr.rel (0) target = $region37
    $region36: #{tpu_custom_call.1} parent=1 // pred_region
      %83 = dma.done [#allocation6], 2048
    $region37: #{tpu_custom_call.1} parent=1 // pred_fallthru
      _
    // Predicated region
    $region38: #{tpu_custom_call.1} parent=1 // pred_check
      _
    $region39: #{tpu_custom_call.1} parent=1 // pred_check_branch
      %85 = sbr.rel (0) target = $region41
    $region40: #{tpu_custom_call.1} parent=1 // pred_region
      %87 = dma.done [#allocation9], 2048
    $region41: #{tpu_custom_call.1} parent=1 // pred_fallthru
      _
    %v88 = vld [vmem:[#allocation2] sm:$0xff]
    %v89 = vld [vmem:[#allocation2 + $0x8] sm:$0xff]
    %v90 = vld [vmem:[#allocation5] sm:$0xff]
    %v91 = vld [vmem:[#allocation5 + $0x8] sm:$0xff]
    %v92 = vld [vmem:[#allocation5 + $0x10] sm:$0xff]
    %v93 = vld [vmem:[#allocation5 + $0x18] sm:$0xff]
    %v94 = vld [vmem:[#allocation5 + $0x20] sm:$0xff]
    %v95 = vld [vmem:[#allocation5 + $0x28] sm:$0xff]
    %v96 = vld [vmem:[#allocation5 + $0x30] sm:$0xff]
    %v97 = vld [vmem:[#allocation5 + $0x38] sm:$0xff]
    %v98 = vld [vmem:[#allocation5 + $0x40] sm:$0xff]
    %v99 = vld [vmem:[#allocation5 + $0x48] sm:$0xff]
    %v100 = vld [vmem:[#allocation5 + $0x50] sm:$0xff]
    %v101 = vld [vmem:[#allocation5 + $0x58] sm:$0xff]
    %v102 = vld [vmem:[#allocation5 + $0x60] sm:$0xff]
    %v103 = vld [vmem:[#allocation5 + $0x68] sm:$0xff]
    %v104 = vld [vmem:[#allocation5 + $0x70] sm:$0xff]
    %v105 = vld [vmem:[#allocation5 + $0x78] sm:$0xff]
    %v106 = vld [vmem:[#allocation5 + $0x80] sm:$0xff]
    %v107 = vld [vmem:[#allocation5 + $0x88] sm:$0xff]
    %v108 = vld [vmem:[#allocation5 + $0x90] sm:$0xff]
    %v109 = vld [vmem:[#allocation5 + $0x98] sm:$0xff]
    %v110 = vld [vmem:[#allocation5 + $0xa0] sm:$0xff]
    %v111 = vld [vmem:[#allocation5 + $0xa8] sm:$0xff]
    %v112 = vld [vmem:[#allocation5 + $0xb0] sm:$0xff]
    %v113 = vld [vmem:[#allocation5 + $0xb8] sm:$0xff]
    %v114 = vld [vmem:[#allocation5 + $0xc0] sm:$0xff]
    %v115 = vld [vmem:[#allocation5 + $0xc8] sm:$0xff]
    %v116 = vld [vmem:[#allocation5 + $0xd0] sm:$0xff]
    %v117 = vld [vmem:[#allocation5 + $0xd8] sm:$0xff]
    %v118 = vld [vmem:[#allocation5 + $0xe0] sm:$0xff]
    %v119 = vld [vmem:[#allocation5 + $0xe8] sm:$0xff]
    %v120 = vld [vmem:[#allocation5 + $0xf0] sm:$0xff]
    %v121 = vld [vmem:[#allocation5 + $0xf8] sm:$0xff]
    %v122 = vld [vmem:[#allocation5 + $0x100] sm:$0xff]
    %v123 = vld [vmem:[#allocation5 + $0x108] sm:$0xff]
    %v124 = vld [vmem:[#allocation5 + $0x110] sm:$0xff]
    %v125 = vld [vmem:[#allocation5 + $0x118] sm:$0xff]
    %v126 = vld [vmem:[#allocation5 + $0x120] sm:$0xff]
    %v127 = vld [vmem:[#allocation5 + $0x128] sm:$0xff]
    %v128 = vld [vmem:[#allocation5 + $0x130] sm:$0xff]
    %v129 = vld [vmem:[#allocation5 + $0x138] sm:$0xff]
    %v130 = vld [vmem:[#allocation5 + $0x140] sm:$0xff]
    %v131 = vld [vmem:[#allocation5 + $0x148] sm:$0xff]
    %v132 = vld [vmem:[#allocation5 + $0x150] sm:$0xff]
    %v133 = vld [vmem:[#allocation5 + $0x158] sm:$0xff]
    %v134 = vld [vmem:[#allocation5 + $0x160] sm:$0xff]
    %v135 = vld [vmem:[#allocation5 + $0x168] sm:$0xff]
    %v136 = vld [vmem:[#allocation5 + $0x170] sm:$0xff]
    %v137 = vld [vmem:[#allocation5 + $0x178] sm:$0xff]
    %v138 = vld [vmem:[#allocation5 + $0x180] sm:$0xff]
    %v139 = vld [vmem:[#allocation5 + $0x188] sm:$0xff]
    %v140 = vld [vmem:[#allocation5 + $0x190] sm:$0xff]
    %v141 = vld [vmem:[#allocation5 + $0x198] sm:$0xff]
    %v142 = vld [vmem:[#allocation5 + $0x1a0] sm:$0xff]
    %v143 = vld [vmem:[#allocation5 + $0x1a8] sm:$0xff]
    %v144 = vld [vmem:[#allocation5 + $0x1b0] sm:$0xff]
    %v145 = vld [vmem:[#allocation5 + $0x1b8] sm:$0xff]
    %v146 = vld [vmem:[#allocation5 + $0x1c0] sm:$0xff]
    %v147 = vld [vmem:[#allocation5 + $0x1c8] sm:$0xff]
    %v148 = vld [vmem:[#allocation5 + $0x1d0] sm:$0xff]
    %v149 = vld [vmem:[#allocation5 + $0x1d8] sm:$0xff]
    %v150 = vld [vmem:[#allocation5 + $0x1e0] sm:$0xff]
    %v151 = vld [vmem:[#allocation5 + $0x1e8] sm:$0xff]
    %v152 = vld [vmem:[#allocation5 + $0x1f0] sm:$0xff]
    %v153 = vld [vmem:[#allocation5 + $0x1f8] sm:$0xff]
    %v154 = vld [vmem:[#allocation5 + $0x200] sm:$0xff]
    %v155 = vld [vmem:[#allocation5 + $0x208] sm:$0xff]
    %v156 = vld [vmem:[#allocation5 + $0x210] sm:$0xff]
    %v157 = vld [vmem:[#allocation5 + $0x218] sm:$0xff]
    %v158 = vld [vmem:[#allocation5 + $0x220] sm:$0xff]
    %v159 = vld [vmem:[#allocation5 + $0x228] sm:$0xff]
    %v160 = vld [vmem:[#allocation5 + $0x230] sm:$0xff]
    %v161 = vld [vmem:[#allocation5 + $0x238] sm:$0xff]
    %v162 = vld [vmem:[#allocation5 + $0x240] sm:$0xff]
    %v163 = vld [vmem:[#allocation5 + $0x248] sm:$0xff]
    %v164 = vld [vmem:[#allocation5 + $0x250] sm:$0xff]
    %v165 = vld [vmem:[#allocation5 + $0x258] sm:$0xff]
    %v166 = vld [vmem:[#allocation5 + $0x260] sm:$0xff]
    %v167 = vld [vmem:[#allocation5 + $0x268] sm:$0xff]
    %v168 = vld [vmem:[#allocation5 + $0x270] sm:$0xff]
    %v169 = vld [vmem:[#allocation5 + $0x278] sm:$0xff]
    %v170 = vld [vmem:[#allocation5 + $0x280] sm:$0xff]
    %v171 = vld [vmem:[#allocation5 + $0x288] sm:$0xff]
    %v172 = vld [vmem:[#allocation5 + $0x290] sm:$0xff]
    %v173 = vld [vmem:[#allocation5 + $0x298] sm:$0xff]
    %v174 = vld [vmem:[#allocation5 + $0x2a0] sm:$0xff]
    %v175 = vld [vmem:[#allocation5 + $0x2a8] sm:$0xff]
    %v176 = vld [vmem:[#allocation5 + $0x2b0] sm:$0xff]
    %v177 = vld [vmem:[#allocation5 + $0x2b8] sm:$0xff]
    %v178 = vld [vmem:[#allocation5 + $0x2c0] sm:$0xff]
    %v179 = vld [vmem:[#allocation5 + $0x2c8] sm:$0xff]
    %v180 = vld [vmem:[#allocation5 + $0x2d0] sm:$0xff]
    %v181 = vld [vmem:[#allocation5 + $0x2d8] sm:$0xff]
    %v182 = vld [vmem:[#allocation5 + $0x2e0] sm:$0xff]
    %v183 = vld [vmem:[#allocation5 + $0x2e8] sm:$0xff]
    %v184 = vld [vmem:[#allocation5 + $0x2f0] sm:$0xff]
    %v185 = vld [vmem:[#allocation5 + $0x2f8] sm:$0xff]
    %v186 = vld [vmem:[%s4] sm:$0x7]
    %v188 = vperm.slane %v186, 0
    %v189 = vperm.slane %v186, 1
    %v190 = vperm.slane %v186, 2
    %194 = vmatpush.msra.mxu0 %v135
    %195 = vmatpush.msra.mxu0 %v132
    %196 = vmatpush.msra.mxu0 %v129
    %197 = vmatpush.msra.mxu0 %v126
    %198 = vmatpush.msra.mxu0 %v123
    %199 = vmatpush.msra.mxu0 %v120
    %200 = vmatpush.msra.mxu0 %v117
    %201 = vmatpush.msra.mxu0 %v114
    %202 = vmatpush.msra.mxu0 %v111
    %203 = vmatpush.msra.mxu0 %v108
    %204 = vmatpush.msra.mxu0 %v105
    %205 = vmatpush.msra.mxu0 %v102
    %206 = vmatpush.msra.mxu0 %v99
    %207 = vmatpush.msra.mxu0 %v96
    %208 = vmatpush.msra.mxu0 %v93
    %209 = vmatpush.msra.mxu0 %v90
    %210 = vmatmul.f32.gmra.mxu0 %v88
    %v211 = vpop.f32.mrf.mxu0
    %v212 = vadd.f32 %v188, %v211
    %213 = vdwg.mxu0
    %214 = vmatpush.msra.mxu0 %v183
    %215 = vmatpush.msra.mxu0 %v180
    %216 = vmatpush.msra.mxu0 %v177
    %217 = vmatpush.msra.mxu0 %v174
    %218 = vmatpush.msra.mxu0 %v171
    %219 = vmatpush.msra.mxu0 %v168
    %220 = vmatpush.msra.mxu0 %v165
    %221 = vmatpush.msra.mxu0 %v162
    %222 = vmatpush.msra.mxu0 %v159
    %223 = vmatpush.msra.mxu0 %v156
    %224 = vmatpush.msra.mxu0 %v153
    %225 = vmatpush.msra.mxu0 %v150
    %226 = vmatpush.msra.mxu0 %v147
    %227 = vmatpush.msra.mxu0 %v144
    %228 = vmatpush.msra.mxu0 %v141
    %229 = vmatpush.msra.mxu0 %v138
    %230 = vmatmul.f32.gmra.mxu0 %v89
    %v231 = vpop.f32.mrf.mxu0
    %v232 = vadd.f32 %v212, %v231
    %233 = vdwg.mxu0
    %234 = vmatpush.msra.mxu0 %v136
    %235 = vmatpush.msra.mxu0 %v133
    %236 = vmatpush.msra.mxu0 %v130
    %237 = vmatpush.msra.mxu0 %v127
    %238 = vmatpush.msra.mxu0 %v124
    %239 = vmatpush.msra.mxu0 %v121
    %240 = vmatpush.msra.mxu0 %v118
    %241 = vmatpush.msra.mxu0 %v115
    %242 = vmatpush.msra.mxu0 %v112
    %243 = vmatpush.msra.mxu0 %v109
    %244 = vmatpush.msra.mxu0 %v106
    %245 = vmatpush.msra.mxu0 %v103
    %246 = vmatpush.msra.mxu0 %v100
    %247 = vmatpush.msra.mxu0 %v97
    %248 = vmatpush.msra.mxu0 %v94
    %249 = vmatpush.msra.mxu0 %v91
    %250 = vmatmul.f32.gmra.mxu0 %v88
    %v251 = vpop.f32.mrf.mxu0
    %v252 = vadd.f32 %v189, %v251
    %253 = vdwg.mxu0
    %254 = vmatpush.msra.mxu0 %v184
    %255 = vmatpush.msra.mxu0 %v181
    %256 = vmatpush.msra.mxu0 %v178
    %257 = vmatpush.msra.mxu0 %v175
    %258 = vmatpush.msra.mxu0 %v172
    %259 = vmatpush.msra.mxu0 %v169
    %260 = vmatpush.msra.mxu0 %v166
    %261 = vmatpush.msra.mxu0 %v163
    %262 = vmatpush.msra.mxu0 %v160
    %263 = vmatpush.msra.mxu0 %v157
    %264 = vmatpush.msra.mxu0 %v154
    %265 = vmatpush.msra.mxu0 %v151
    %266 = vmatpush.msra.mxu0 %v148
    %267 = vmatpush.msra.mxu0 %v145
    %268 = vmatpush.msra.mxu0 %v142
    %269 = vmatpush.msra.mxu0 %v139
    %270 = vmatmul.f32.gmra.mxu0 %v89
    %v271 = vpop.f32.mrf.mxu0
    %v272 = vadd.f32 %v252, %v271
    %273 = vdwg.mxu0
    %274 = vmatpush.msra.mxu0 %v137
    %275 = vmatpush.msra.mxu0 %v134
    %276 = vmatpush.msra.mxu0 %v131
    %277 = vmatpush.msra.mxu0 %v128
    %278 = vmatpush.msra.mxu0 %v125
    %279 = vmatpush.msra.mxu0 %v122
    %280 = vmatpush.msra.mxu0 %v119
    %281 = vmatpush.msra.mxu0 %v116
    %282 = vmatpush.msra.mxu0 %v113
    %283 = vmatpush.msra.mxu0 %v110
    %284 = vmatpush.msra.mxu0 %v107
    %285 = vmatpush.msra.mxu0 %v104
    %286 = vmatpush.msra.mxu0 %v101
    %287 = vmatpush.msra.mxu0 %v98
    %288 = vmatpush.msra.mxu0 %v95
    %289 = vmatpush.msra.mxu0 %v92
    %290 = vmatmul.f32.gmra.mxu0 %v88
    %v291 = vpop.f32.mrf.mxu0
    %v292 = vadd.f32 %v190, %v291
    %293 = vdwg.mxu0
    %294 = vmatpush.msra.mxu0 %v185
    %295 = vmatpush.msra.mxu0 %v182
    %296 = vmatpush.msra.mxu0 %v179
    %297 = vmatpush.msra.mxu0 %v176
    %298 = vmatpush.msra.mxu0 %v173
    %299 = vmatpush.msra.mxu0 %v170
    %300 = vmatpush.msra.mxu0 %v167
    %301 = vmatpush.msra.mxu0 %v164
    %302 = vmatpush.msra.mxu0 %v161
    %303 = vmatpush.msra.mxu0 %v158
    %304 = vmatpush.msra.mxu0 %v155
    %305 = vmatpush.msra.mxu0 %v152
    %306 = vmatpush.msra.mxu0 %v149
    %307 = vmatpush.msra.mxu0 %v146
    %308 = vmatpush.msra.mxu0 %v143
    %309 = vmatpush.msra.mxu0 %v140
    %310 = vmatmul.f32.gmra.mxu0 %v89
    %v311 = vpop.f32.mrf.mxu0
    %v312 = vadd.f32 %v292, %v311
    %313 = vdwg.mxu0
    %v314 = vxor.u32 %v232, 2147483648
    %v315 = vmul.f32 %v314, 1.442695
    %v316 = vpow.pop %v315
    %v317 = vadd.f32 %v316, 1.0
    %v318 = vrcp.pop %v317
    %v319 = vmul.f32 %v317, %v318
    %v320 = vsub.f32 1.0, %v319
    %v321 = vmul.f32 %v318, %v320
    %v322 = vadd.f32 %v318, %v321
    %vm323 = vweird.f32 %v317
    %vm324 = vweird.f32 %v318
    %vm325 = vmor %vm323, %vm324
    %v326 = vsel %vm325, %v318, %v322
    %v327 = vand.u32 2147483647, %v317
    %vm328 = vcmp.eq.f32.partialorder %v327, 8.507059e+37
    %v329 = vand.u32 %v317, 2147483648
    %v330 = vor.u32 1.1754944e-38, %v329
    %v331 = vsel %vm328, %v330, %v326
    %v332 = vmul.f32 1.0, %v331
    %v333 = vxor.u32 %v272, 2147483648
    %v334 = vmul.f32 %v333, 1.442695
    %v335 = vpow.pop %v334
    %v336 = vadd.f32 %v335, 1.0
    %v337 = vrcp.pop %v336
    %v338 = vmul.f32 %v336, %v337
    %v339 = vsub.f32 1.0, %v338
    %v340 = vmul.f32 %v337, %v339
    %v341 = vadd.f32 %v337, %v340
    %vm342 = vweird.f32 %v336
    %vm343 = vweird.f32 %v337
    %vm344 = vmor %vm342, %vm343
    %v345 = vsel %vm344, %v337, %v341
    %v346 = vand.u32 2147483647, %v336
    %vm347 = vcmp.eq.f32.partialorder %v346, 8.507059e+37
    %v348 = vand.u32 %v336, 2147483648
    %v349 = vor.u32 1.1754944e-38, %v348
    %v350 = vsel %vm347, %v349, %v345
    %v351 = vmul.f32 1.0, %v350
    %v352 = vmul.f32 %v332, %v89
    %v353 = vld [vmem:[#allocation7] sm:$0xff]
    %v354 = vld [vmem:[#allocation7 + $0x8] sm:$0xff]
    %v355 = vld [vmem:[#allocation7 + $0x10] sm:$0xff]
    %v356 = vld [vmem:[#allocation7 + $0x18] sm:$0xff]
    %v357 = vld [vmem:[#allocation7 + $0x20] sm:$0xff]
    %v358 = vld [vmem:[#allocation7 + $0x28] sm:$0xff]
    %v359 = vld [vmem:[#allocation7 + $0x30] sm:$0xff]
    %v360 = vld [vmem:[#allocation7 + $0x38] sm:$0xff]
    %v361 = vld [vmem:[#allocation7 + $0x40] sm:$0xff]
    %v362 = vld [vmem:[#allocation7 + $0x48] sm:$0xff]
    %v363 = vld [vmem:[#allocation7 + $0x50] sm:$0xff]
    %v364 = vld [vmem:[#allocation7 + $0x58] sm:$0xff]
    %v365 = vld [vmem:[#allocation7 + $0x60] sm:$0xff]
    %v366 = vld [vmem:[#allocation7 + $0x68] sm:$0xff]
    %v367 = vld [vmem:[#allocation7 + $0x70] sm:$0xff]
    %v368 = vld [vmem:[#allocation7 + $0x78] sm:$0xff]
    %369 = vmatpush.msra.mxu0 %v368
    %370 = vmatpush.msra.mxu0 %v367
    %371 = vmatpush.msra.mxu0 %v366
    %372 = vmatpush.msra.mxu0 %v365
    %373 = vmatpush.msra.mxu0 %v364
    %374 = vmatpush.msra.mxu0 %v363
    %375 = vmatpush.msra.mxu0 %v362
    %376 = vmatpush.msra.mxu0 %v361
    %377 = vmatpush.msra.mxu0 %v360
    %378 = vmatpush.msra.mxu0 %v359
    %379 = vmatpush.msra.mxu0 %v358
    %380 = vmatpush.msra.mxu0 %v357
    %381 = vmatpush.msra.mxu0 %v356
    %382 = vmatpush.msra.mxu0 %v355
    %383 = vmatpush.msra.mxu0 %v354
    %384 = vmatpush.msra.mxu0 %v353
    %385 = vmatmul.f32.gmra.mxu0 %v352
    %v386 = vpop.f32.mrf.mxu0
    %v387 = vadd.f32 0.0, %v386
    %388 = vdwg.mxu0
    %v389 = vadd.f32 %v312, %v387
    %v390 = vtanh.pop %v389
    %v391 = vmul.f32 %v351, %v89
    %v392 = vsub.f32 1.0, %v351
    %v393 = vmul.f32 %v392, %v390
    %v394 = vadd.f32 %v391, %v393
    %v395 = vld [vmem:[#allocation8] sm:$0xff]
    %v396 = vld [vmem:[#allocation8 + $0x8] sm:$0xff]
    %v397 = vld [vmem:[#allocation8 + $0x10] sm:$0xff]
    %v398 = vld [vmem:[#allocation8 + $0x18] sm:$0xff]
    %v399 = vld [vmem:[#allocation8 + $0x20] sm:$0xff]
    %v400 = vld [vmem:[#allocation8 + $0x28] sm:$0xff]
    %v401 = vld [vmem:[#allocation8 + $0x30] sm:$0xff]
    %v402 = vld [vmem:[#allocation8 + $0x38] sm:$0xff]
    %v403 = vld [vmem:[#allocation8 + $0x40] sm:$0xff]
    %v404 = vld [vmem:[#allocation8 + $0x48] sm:$0xff]
    %v405 = vld [vmem:[#allocation8 + $0x50] sm:$0xff]
    %v406 = vld [vmem:[#allocation8 + $0x58] sm:$0xff]
    %v407 = vld [vmem:[#allocation8 + $0x60] sm:$0xff]
    %v408 = vld [vmem:[#allocation8 + $0x68] sm:$0xff]
    %v409 = vld [vmem:[#allocation8 + $0x70] sm:$0xff]
    %v410 = vld [vmem:[#allocation8 + $0x78] sm:$0xff]
    %v411 = vld [vmem:[%s5] sm:$0x1]
    %v413 = vperm.slane %v411, 0
    %415 = vmatpush.msra.mxu0 %v410
    %416 = vmatpush.msra.mxu0 %v409
    %417 = vmatpush.msra.mxu0 %v408
    %418 = vmatpush.msra.mxu0 %v407
    %419 = vmatpush.msra.mxu0 %v406
    %420 = vmatpush.msra.mxu0 %v405
    %421 = vmatpush.msra.mxu0 %v404
    %422 = vmatpush.msra.mxu0 %v403
    %423 = vmatpush.msra.mxu0 %v402
    %424 = vmatpush.msra.mxu0 %v401
    %425 = vmatpush.msra.mxu0 %v400
    %426 = vmatpush.msra.mxu0 %v399
    %427 = vmatpush.msra.mxu0 %v398
    %428 = vmatpush.msra.mxu0 %v397
    %429 = vmatpush.msra.mxu0 %v396
    %430 = vmatpush.msra.mxu0 %v395
    %431 = vmatmul.f32.gmra.mxu0 %v394
    %v432 = vpop.f32.mrf.mxu0
    %v433 = vadd.f32 %v413, %v432
    %434 = vdwg.mxu0
    %435 = vst [vmem:[#allocation10] sm:$0xff] %v433
    %436 = vst [vmem:[#allocation11] sm:$0xff] %v394
    // Predicated region
    $region42: #{tpu_custom_call.1} parent=1 // pred_check
      _
    $region43: #{tpu_custom_call.1} parent=1 // pred_check_branch
      %438 = sbr.rel (0) target = $region45
    $region44: #{tpu_custom_call.1} parent=1 // pred_region
      %440 = vsyncadd [#allocation4], 0
      %s442 = sshll.u32 [#allocation10], 4
      %s443 = int_to_ptr.vmem [resolvable:$true] %s442
      %s444 = sshll.u32 %s6, 4
      %s445 = int_to_ptr.hbm [resolvable:$true] %s444
      %447 = dma.vmem_to_hbm [thread:$0]  %s443, 128, %s445, [#allocation4]
    $region45: #{tpu_custom_call.1} parent=1 // pred_fallthru
      _
    // Predicated region
    $region46: #{tpu_custom_call.1} parent=1 // pred_check
      _
    $region47: #{tpu_custom_call.1} parent=1 // pred_check_branch
      %449 = sbr.rel (0) target = $region49
    $region48: #{tpu_custom_call.1} parent=1 // pred_region
      %451 = vsyncadd [#allocation12], 0
      %s453 = sshll.u32 [#allocation11], 4
      %s454 = int_to_ptr.vmem [resolvable:$true] %s453
      %s455 = sshll.u32 %s7, 4
      %s456 = int_to_ptr.hbm [resolvable:$true] %s455
      %458 = dma.vmem_to_hbm [thread:$0]  %s454, 128, %s456, [#allocation12]
    $region49: #{tpu_custom_call.1} parent=1 // pred_fallthru
      _
    // Predicated region
    $region50: #{tpu_custom_call.1} parent=1 // pred_check
      _
    $region51: #{tpu_custom_call.1} parent=1 // pred_check_branch
      %460 = sbr.rel (0) target = $region53
    $region52: #{tpu_custom_call.1} parent=1 // pred_region
      %462 = dma.done [#allocation4], 128
    $region53: #{tpu_custom_call.1} parent=1 // pred_fallthru
      _
    // Predicated region
    $region54: #{tpu_custom_call.1} parent=1 // pred_check
      _
    $region55: #{tpu_custom_call.1} parent=1 // pred_check_branch
      %464 = sbr.rel (0) target = $region57
    $region56: #{tpu_custom_call.1} parent=1 // pred_region
      %466 = dma.done [#allocation12], 128
    $region57: #{tpu_custom_call.1} parent=1 // pred_fallthru
      _
    %467 = vsyncpa [#allocation3], 1
    %468 = vsyncpa [#allocation6], 1
    %469 = vsyncpa [#allocation9], 1
    %470 = vsyncpa [#allocation4], 1
    %471 = vsyncpa [#allocation12], 1

</llo_original>
